<compile_context>
chip_gen: v7x
topology: tpu7x:2x2x1
jax: 0.10.0
libtpu: 0.0.40
codegen_flags: <defaults>
</compile_context>

<pallas_src>
import functools

import jax
import jax.numpy as jnp
from jax.experimental import pallas as pl
from jax.experimental.pallas import tpu as pltpu


# ---------------------------------------------------------------------------
# Pallas kernels
# ---------------------------------------------------------------------------
def _folded_kernel(x_ref, wt_ref, o_ref):
    # Entire network (RefNet == identity) folded to one K x K operator:  O = W^T @ X.
    o_ref[...] = jnp.dot(wt_ref[...], x_ref[...],
                         preferred_element_type=jnp.float32).astype(o_ref.dtype)


def _staged_kernel(x_ref, p0t_ref, r0t_ref, at_ref, rt_ref, o_ref, *, S):
    # Staged path (kept for when RefNet lands): deg/out stay in vregs across all stages.
    x = x_ref[...]                                                        # (K, TXY)
    deg = jnp.dot(p0t_ref[...], x, preferred_element_type=jnp.float32)    # (CM, TXY)
    out = jnp.dot(r0t_ref[...], deg, preferred_element_type=jnp.float32)  # (K, TXY)
    for s in range(S):
        # out <- out - delta_s*(out @ A_s - deg @ R_s); delta pre-folded into A'_s, R'_s.
        # TODO(synk): RefNet is referenced by StageBlock but not defined in the provided
        # source; treated as identity, so err2 == 0 and eta has no effect.
        out = (out
               - jnp.dot(at_ref[s], out, preferred_element_type=jnp.float32)
               + jnp.dot(rt_ref[s], deg, preferred_element_type=jnp.float32))
    o_ref[...] = out.astype(o_ref.dtype)


# ---------------------------------------------------------------------------
# pallas_call wrappers
# ---------------------------------------------------------------------------
def _pick_xy_tile(XY):
    # Lane tile over x*y.  Keep blocks big (>=512 lanes ideally) to amortize the
    # ~0.35us/grid-step overhead; full-extent single block is always legal and best at
    # small sizes.  For very large images use a 128-multiple tile (tail block is masked,
    # which is safe here because every output column depends only on its own input column).
    if XY <= 4096:
        return XY
    for t in (4096, 2048, 1024, 512, 256, 128):
        if XY % t == 0:
            return t
    return 2048


def _mainnet_pallas_folded(X, Wt, *, out_dtype):
    B, K, XY = X.shape
    TXY = _pick_xy_tile(XY)
    return pl.pallas_call(
        _folded_kernel,
        out_shape=jax.ShapeDtypeStruct((B, K, XY), out_dtype),
        grid=(B, pl.cdiv(XY, TXY)),
        in_specs=[
            pl.BlockSpec((None, K, TXY), lambda b, j: (b, 0, j)),   # X[b] column tile
            pl.BlockSpec((K, K), lambda b, j: (0, 0)),              # folded operator (VMEM-resident)
        ],
        out_specs=pl.BlockSpec((None, K, TXY), lambda b, j: (b, 0, j)),
        compiler_params=pltpu.CompilerParams(
            dimension_semantics=("parallel", "parallel")),
    )(X, Wt)


def _mainnet_pallas_staged(X, P0t, R0t, At, Rt, *, out_dtype):
    B, K, XY = X.shape
    CM = P0t.shape[0]
    S = At.shape[0]
    TXY = _pick_xy_tile(XY)
    kernel = functools.partial(_staged_kernel, S=S)
    return pl.pallas_call(
        kernel,
        out_shape=jax.ShapeDtypeStruct((B, K, XY), out_dtype),
        grid=(B, pl.cdiv(XY, TXY)),
        in_specs=[
            pl.BlockSpec((None, K, TXY), lambda b, j: (b, 0, j)),   # X[b] column tile
            pl.BlockSpec((CM, K), lambda b, j: (0, 0)),             # P0^T
            pl.BlockSpec((K, CM), lambda b, j: (0, 0)),             # R0^T
            pl.BlockSpec((S, K, K), lambda b, j: (0, 0, 0)),        # delta_s * A_s^T
            pl.BlockSpec((S, K, CM), lambda b, j: (0, 0, 0)),       # delta_s * R_s^T
        ],
        out_specs=pl.BlockSpec((None, K, TXY), lambda b, j: (b, 0, j)),
        compiler_params=pltpu.CompilerParams(
            dimension_semantics=("parallel", "parallel")),
    )(X, P0t, R0t, At, Rt)


# ---------------------------------------------------------------------------
# Parameter construction (deterministic, mirrors MainNet.__init__ shapes)
# ---------------------------------------------------------------------------
def _xavier(key, shape, fan_in, fan_out):
    bound = (6.0 / (fan_in + fan_out)) ** 0.5
    return jax.random.uniform(key, shape, jnp.float32, -bound, bound)


def _proj_mat(wp, C, U, V):
    """Conv2d(u*v -> M, 1x1) weight (M, U*V) -> P[(u,v,ci),(co,m)] = eye[ci,co]*wp[m,u,v].

    Rows are ordered (u, v, c) to match a pure-view flatten of (b,u,v,c,x,y)."""
    M = wp.shape[0]
    P = jnp.einsum("muv,ij->uvijm", wp.reshape(M, U, V), jnp.eye(C, dtype=wp.dtype))
    return P.reshape(U * V * C, C * M)


def _recon_mat(w_recon, U, V):
    """ConvTranspose2d weight (C_in, C_out, U, V-1) on input spatial (1,2).

    Input column m=0 writes output cols [0, V-2] (pad right); m=1 writes [1, V-1]
    (pad left).  Returns R[(c_in, m), (u, v, c_out)] and the full (M,Ci,Co,U,V) tensor."""
    C = w_recon.shape[0]
    w0 = jnp.pad(w_recon, ((0, 0), (0, 0), (0, 0), (0, 1)))
    w1 = jnp.pad(w_recon, ((0, 0), (0, 0), (0, 0), (1, 0)))
    wf = jnp.stack([w0, w1], axis=0)                      # (M, Ci, Co, U, V)
    R = jnp.transpose(wf, (1, 0, 3, 4, 2)).reshape(C * 2, U * V * C)
    return R, wf


def make_params(key, *, ang, C, M, stage_num):
    assert M == 2, "original code's reshape(b, c, 1, 2, x, y) requires measurementNum == 2"
    U = V = ang
    UV = U * V
    K = UV * C
    k = jax.random.split(key, 2 + 4 * stage_num)

    # proj_init: Conv2d(u*v -> M, 1x1, bias=False); recon_init: ConvTranspose2d kernel (u, v-1).
    wp_init = _xavier(k[0], (M, UV), UV, M)
    wrec_init = _xavier(k[1], (C, C, U, V - 1), C * U * (V - 1), C * U * (V - 1))
    P0 = _proj_mat(wp_init, C, U, V)                      # (K, C*M)
    R0, wr_full_init = _recon_mat(wrec_init, U, V)        # (C*M, K)

    params = {"wp_init": wp_init, "wr_init_full": wr_full_init, "stages": []}

    W = P0 @ R0                                           # running full-network fold
    eye = jnp.eye(K, dtype=jnp.float32)
    a_list, r_list = [], []
    for s in range(stage_num):
        ks = k[2 + 4 * s: 2 + 4 * (s + 1)]
        wp = _xavier(ks[0], (M, UV), UV, M)
        wrec = _xavier(ks[1], (C, C, U, V - 1), C * U * (V - 1), C * U * (V - 1))
        delta = jax.random.uniform(ks[2], (1,), jnp.float32)
        eta = jax.random.uniform(ks[3], (1,), jnp.float32)
        Ps = _proj_mat(wp, C, U, V)
        Rs, wr_full = _recon_mat(wrec, U, V)
        params["stages"].append({"wp": wp, "wr_full": wr_full, "delta": delta, "eta": eta})

        A_sc = delta[0] * (Ps @ Rs)                       # delta pre-folded on host
        R_sc = delta[0] * Rs
        a_list.append(A_sc)
        r_list.append(R_sc)
        # out_s = out_{s-1}(I - delta A_s) + delta deg R_s  with deg = X P0  =>
        W = W @ (eye - A_sc) + P0 @ R_sc

    # Pallas-form (feature-major / transposed) operands.
    params["w_total_t"] = W.T                                                 # (K, K)
    params["p0_t"] = P0.T                                                     # (C*M, K)
    params["r0_t"] = R0.T                                                     # (K, C*M)
    params["a_t"] = (jnp.stack([a.T for a in a_list]) if a_list
                     else jnp.zeros((0, K, K), jnp.float32))                  # (S, K, K)
    params["r_t"] = (jnp.stack([r.T for r in r_list]) if r_list
                     else jnp.zeros((0, K, C * M), jnp.float32))              # (S, K, C*M)
    return params


# ---------------------------------------------------------------------------
# MainNet forward (Pallas) and pure-jnp reference
# ---------------------------------------------------------------------------
def mainnet_forward(lf, params, *, folded=True, compute_dtype=None):
    b, u, v, c, x, y = lf.shape
    K, XY = u * v * c, x * y
    X = lf.reshape(b, K, XY)          # PURE VIEW of (b,u,v,c,x,y): no transpose HBM pass
    cast = (lambda a: a.astype(compute_dtype)) if compute_dtype is not None else (lambda a: a)
    if folded:
        out = _mainnet_pallas_folded(cast(X), cast(params["w_total_t"]), out_dtype=lf.dtype)
    else:
        out = _mainnet_pallas_staged(cast(X), cast(params["p0_t"]), cast(params["r0_t"]),
                                     cast(params["a_t"]), cast(params["r_t"]),
                                     out_dtype=lf.dtype)
    return out.reshape(b, u, v, c, x, y)   # pure view back to the PyTorch output layout


def reference_forward(lf, params):
    b, u, v, c, x, y = lf.shape
    M = params["wp_init"].shape[0]
    wp = params["wp_init"].reshape(M, u, v)
    lf32 = lf.astype(jnp.float32)
    deg = jnp.einsum("buvcxy,muv->bxycm", lf32, wp)
    out = jnp.einsum("bxycm,mcdhw->bxydhw", deg, params["wr_init_full"])
    for sp in params["stages"]:
        wp_s = sp["wp"].reshape(M, u, v)
        reproj = jnp.einsum("bxycuv,muv->bxycm", out, wp_s)
        err1 = jnp.einsum("bxycm,mcdhw->bxydhw", reproj - deg, sp["wr_full"])
        err2 = jnp.zeros_like(out)        # RefNet treated as identity => err2 == 0
        out = out - sp["delta"][0] * (err1 + sp["eta"][0] * err2)
    return out.transpose(0, 4, 5, 3, 1, 2)   # (b,x,y,c,u,v) -> (b,u,v,c,x,y)


# ---------------------------------------------------------------------------
if __name__ == "__main__":
    # opt: angResolution=4, channelNum=2, measurementNum=2, stageNum=2
    b, ang, c, x, y = 2, 4, 2, 8, 8
    M, stage_num = 2, 2

    key = jax.random.PRNGKey(0)
    k_lf, k_par = jax.random.split(key)
    lf = jax.random.normal(k_lf, (b, ang, ang, c, x, y), jnp.float32)
    params = make_params(k_par, ang=ang, C=c, M=M, stage_num=stage_num)

    ref = jax.block_until_ready(reference_forward(lf, params))

    # Default: fully folded single-GEMM kernel (valid while RefNet == identity).
    fwd_folded = jax.jit(functools.partial(mainnet_forward, folded=True))
    out_folded = jax.block_until_ready(fwd_folded(lf, params))
    assert out_folded.shape == (b, ang, ang, c, x, y), out_folded.shape
    assert jnp.allclose(out_folded, ref, rtol=1e-3, atol=1e-3), \
        float(jnp.max(jnp.abs(out_folded - ref)))

    # Staged kernel (kept behind a flag for when RefNet lands) — also checked.
    fwd_staged = jax.jit(functools.partial(mainnet_forward, folded=False))
    out_staged = jax.block_until_ready(fwd_staged(lf, params))
    assert jnp.allclose(out_staged, ref, rtol=1e-3, atol=1e-3), \
        float(jnp.max(jnp.abs(out_staged - ref)))

    print("KERNEL_OK")
</pallas_src>

<mosaic_0001>
module attributes {stable_mosaic.version = 11 : i64} {
  func.func @_folded_kernel(%arg0: i32, %arg1: i32, %arg2: memref<1x32x64xf32, #tpu.memory_space<vmem>>, %arg3: memref<32x32xf32, #tpu.memory_space<vmem>>, %arg4: memref<1x32x64xf32, #tpu.memory_space<vmem>>) attributes {dimension_semantics = [#tpu.dimension_semantics<parallel>, #tpu.dimension_semantics<parallel>], iteration_bounds = array<i64: 2, 1>, scalar_prefetch = 0 : i64, scratch_operands = 0 : i64, tpu.core_type = #tpu.core_type<tc>, window_params = [{transform_indices = @transform_0, window_bounds = array<i64: 1, 32, 64>}, {pipeline_mode = #tpu.pipeline_mode<synchronous>, transform_indices = @transform_1, window_bounds = array<i64: 32, 32>}, {transform_indices = @transform_2, window_bounds = array<i64: 1, 32, 64>}]} {
    %c0 = arith.constant 0 : index
    %c0_0 = arith.constant 0 : index
    %0 = vector.load %arg3[%c0, %c0_0] : memref<32x32xf32, #tpu.memory_space<vmem>>, vector<32x32xf32>
    %c0_1 = arith.constant 0 : index
    %c0_2 = arith.constant 0 : index
    %c0_3 = arith.constant 0 : index
    %1 = vector.load %arg2[%c0_1, %c0_2, %c0_3] : memref<1x32x64xf32, #tpu.memory_space<vmem>>, vector<1x32x64xf32>
    %2 = vector.shape_cast %1 : vector<1x32x64xf32> to vector<32x64xf32>
    %cst = arith.constant dense<0.000000e+00> : vector<32x64xf32>
    %3 = tpu.matmul %0, %2, %cst {dimension_numbers = #tpu.dot_dimension_numbers<[1], [0], [0], [1], [0, 0, 1, 1], [], []>} : vector<32x32xf32>, vector<32x64xf32>, vector<32x64xf32> -> vector<32x64xf32>
    %c0_4 = arith.constant 0 : index
    %c0_5 = arith.constant 0 : index
    %c0_6 = arith.constant 0 : index
    %4 = vector.load %arg4[%c0_4, %c0_5, %c0_6] : memref<1x32x64xf32, #tpu.memory_space<vmem>>, vector<1x32x64xf32>
    %5 = vector.shape_cast %4 : vector<1x32x64xf32> to vector<32x64xf32>
    %6 = vector.shape_cast %3 : vector<32x64xf32> to vector<1x32x64xf32>
    tpu.vector_store %arg4[%c0_4, %c0_5, %c0_6], %6 {strides = array<i32>} : memref<1x32x64xf32, #tpu.memory_space<vmem>>, vector<1x32x64xf32>,
    return
  }
  func.func @transform_0(%arg0: i32, %arg1: i32) -> (i32, i32, i32) {
    %c0_i32 = arith.constant 0 : i32
    %c0_i32_0 = arith.constant 0 : i32
    return %arg0, %c0_i32, %arg1 : i32, i32, i32
  }
  func.func @transform_1(%arg0: i32, %arg1: i32) -> (i32, i32) {
    %c0_i32 = arith.constant 0 : i32
    %c0_i32_0 = arith.constant 0 : i32
    %c0_i32_1 = arith.constant 0 : i32
    return %c0_i32, %c0_i32_0 : i32, i32
  }
  func.func @transform_2(%arg0: i32, %arg1: i32) -> (i32, i32, i32) {
    %c0_i32 = arith.constant 0 : i32
    %c0_i32_0 = arith.constant 0 : i32
    return %arg0, %c0_i32, %arg1 : i32, i32, i32
  }
}

</mosaic_0001>

<llo_original>
// kernel: mainnet_forward.1
$region0: #{mainnet_forward.1}
  #allocation0 [shape = 'u32[]', space=smem, size = 0x4, offset = 0x4, fixed_abs, tag = 'smem constant byte address 0x4 - core index']
  #allocation1 [shape = 'u32[144,128]{1,0:T(1,128)}', space=vmem, size = 0x12000, scoped, tag = 'internal scratch']
  %s0 = inlined_call_operand.vmem [shape: f32[2,32,64], index: 0, kind: input, shape index: {}]
  %s1 = inlined_call_operand.vmem [shape: f32[32,32], index: 1, kind: input, shape index: {}]
  %s2 = inlined_call_operand.vmem [shape: f32[2,32,64], index: 2, kind: output, shape index: {}]
  %s3 = sld [smem:[#allocation0]]
  $region41: #{mainnet_forward.1} parent=0
    _
  %s5 = ssub.s32 1, %s3
  %s6 = scalar_select 0, %s5, %s3
  loop: start=0, step=1, limit=4
  $region2: #{mainnet_forward.1} parent=0 // loop_pre_header
    _
  $region3: #{mainnet_forward.1} parent=0 // loop_header
    %s8 = sphi 0, %s12
    %p9 = scmp.ge.s32.totalorder %s8, 4
    %s15 = sphi 0, %s27
    %s16 = sphi 0, %s23
    %s17 = sphi 0, %s15
    %s18 = sphi 0, %s16
    %s19 = sphi 0, %s17
    %s20 = sphi 0, %s18
    %s32 = sphi 0, %s34
    %s35 = sphi 0, %s32
    %s36 = sphi 0, %s35
    %s52 = sphi 0, %s36
    %s56 = sphi 0, %s56
    %s58 = sphi 0, %s56
    %s59 = sphi 0, %s58
    %s73 = sphi 0, %s59
    %s81 = sphi 0, %s83
    %s84 = sphi 0, %s81
    %s85 = sphi 0, %s84
    %s101 = sphi 0, %s85
  $region4: #{mainnet_forward.1} parent=0 // loop_header_branch
    %11 = sbr.rel (%p9) target = $region8
  $region5: #{mainnet_forward.1} parent=0 // loop_body
    %s13 = ssub.s32 %s8, 1
    %s14 = ssub.s32 %s8, 2
    %s21 = sadd.s32 1, %s16
    %p22 = scmp.ge.s32.totalorder %s21, 1
    %s23 = scalar_select %p22, 0, %s21
    %s24 = sadd.s32 1, %s15
    %s25 = scalar_select %p22, %s24, %s15
    %p26 = scmp.ge.s32.totalorder %s25, 2
    %s27 = scalar_select %p26, 0, %s25
    %s28 = ssub.s32 %s15, %s27
    %s29 = ssub.s32 %s16, %s23
    %s30 = sor.u32 %s28, %s29
    %p31 = scmp.eq.s32.totalorder %s30, 0
    %s33 = sadd.s32 %s32, 1
    %s34 = scalar_select %p31, %s32, %s33
    %p37 = pneg %p31
    %p38 = scmp.eq.s32.totalorder %s8, 1
    %p39 = por %p37, %p38
    %p40 = scmp.ne.s32.totalorder %s32, %s35
    %p41 = scmp.eq.s32.totalorder %s8, 0
    %p42 = por %p40, %p41
    %p43 = scmp.ne.s32.totalorder %s32, %s35
    %p44 = scmp.eq.s32.totalorder %s13, 1
    %p45 = por %p43, %p44
    %p46 = scmp.ne.s32.totalorder %s35, %s36
    %p47 = scmp.eq.s32.totalorder %s13, 0
    %p48 = por %p46, %p47
    %p49 = scmp.ne.s32.totalorder %s35, %s36
    %p50 = scmp.eq.s32.totalorder %s14, 1
    %p51 = por %p49, %p50
    %p53 = scmp.ne.s32.totalorder %s36, %s52
    %p54 = scmp.eq.s32.totalorder %s14, 0
    %p55 = por %p53, %p54
    %s57 = sadd.s32 %s56, 1
    %p60 = scmp.eq.s32.totalorder %s8, 1
    %p61 = scmp.ne.s32.totalorder %s56, %s58
    %p62 = scmp.eq.s32.totalorder %s8, 0
    %p63 = por %p61, %p62
    %p64 = scmp.ne.s32.totalorder %s56, %s58
    %p65 = scmp.eq.s32.totalorder %s13, 1
    %p66 = por %p64, %p65
    %p67 = scmp.ne.s32.totalorder %s58, %s59
    %p68 = scmp.eq.s32.totalorder %s13, 0
    %p69 = por %p67, %p68
    %p70 = scmp.ne.s32.totalorder %s58, %s59
    %p71 = scmp.eq.s32.totalorder %s14, 1
    %p72 = por %p70, %p71
    %p74 = scmp.ne.s32.totalorder %s59, %s73
    %p75 = scmp.eq.s32.totalorder %s14, 0
    %p76 = por %p74, %p75
    %s77 = ssub.s32 %s15, %s27
    %s78 = ssub.s32 %s16, %s23
    %s79 = sor.u32 %s77, %s78
    %p80 = scmp.eq.s32.totalorder %s79, 0
    %s82 = sadd.s32 %s81, 1
    %s83 = scalar_select %p80, %s81, %s82
    %p86 = pneg %p80
    %p87 = scmp.eq.s32.totalorder %s8, 1
    %p88 = por %p86, %p87
    %p89 = scmp.ne.s32.totalorder %s81, %s84
    %p90 = scmp.eq.s32.totalorder %s8, 0
    %p91 = por %p89, %p90
    %p92 = scmp.ne.s32.totalorder %s81, %s84
    %p93 = scmp.eq.s32.totalorder %s13, 1
    %p94 = por %p92, %p93
    %p95 = scmp.ne.s32.totalorder %s84, %s85
    %p96 = scmp.eq.s32.totalorder %s13, 0
    %p97 = por %p95, %p96
    %p98 = scmp.ne.s32.totalorder %s84, %s85
    %p99 = scmp.eq.s32.totalorder %s14, 1
    %p100 = por %p98, %p99
    %p102 = scmp.ne.s32.totalorder %s85, %s101
    %p103 = scmp.eq.s32.totalorder %s14, 0
    %p104 = por %p102, %p103
    %p105 = scmp.le.s32.totalorder 1, %s8
    %p106 = scmp.lt.s32.totalorder %s8, 3
    %p107 = pnand %p105, %p106
    %p108 = pneg %p107
    // Predicated region
    $region9: #{mainnet_forward.1} parent=5 // pred_check
      _
    $region10: #{mainnet_forward.1} parent=5 // pred_check_branch
      %110 = sbr.rel (%p107) target = $region12
    $region11: #{mainnet_forward.1} parent=5 // pred_region
      %s111 = ssub.s32 %s8, 1
      // Predicated region
      $region13: #{mainnet_forward.1} parent=11 // pred_check
        %p112 = pneg %p69
      $region14: #{mainnet_forward.1} parent=11 // pred_check_branch
        %114 = sbr.rel (%p112) target = $region16
      $region15: #{mainnet_forward.1} parent=11 // pred_region
        _
      $region16: #{mainnet_forward.1} parent=11 // pred_fallthru
        _
    $region12: #{mainnet_forward.1} parent=5 // pred_fallthru
      _
    %p115 = scmp.lt.s32.totalorder %s8, 2
    // Predicated region
    $region17: #{mainnet_forward.1} parent=5 // pred_check
      %p116 = pneg %p115
    $region18: #{mainnet_forward.1} parent=5 // pred_check_branch
      %118 = sbr.rel (%p116) target = $region20
    $region19: #{mainnet_forward.1} parent=5 // pred_region
      // Predicated region
      $region21: #{mainnet_forward.1} parent=19 // pred_check
        %p119 = pneg %p42
      $region22: #{mainnet_forward.1} parent=19 // pred_check_branch
        %121 = sbr.rel (%p119) target = $region24
      $region23: #{mainnet_forward.1} parent=19 // pred_region
        %p122 = scmp.lt.s32.totalorder %s15, 1
        %s123 = scalar_select %p122, %s15, 1
        %p124 = scmp.lt.s32.totalorder %s16, 0
        %s125 = scalar_select %p124, %s16, 0
        %s126 = smul.addr %s123, 4
        %s127 = sadd.s32 %s125, %s126
        %s128 = smul.addr %s127, 8
        %s129 = scalar_lea.vmem %s0, %s128
      $region24: #{mainnet_forward.1} parent=19 // pred_fallthru
        _
    $region20: #{mainnet_forward.1} parent=5 // pred_fallthru
      _
    %p130 = scmp.le.s32.totalorder 1, %s8
    %p131 = scmp.lt.s32.totalorder %s8, 3
    %p132 = pnand %p130, %p131
    %p133 = pneg %p132
    // Predicated region
    $region25: #{mainnet_forward.1} parent=5 // pred_check
      _
    $region26: #{mainnet_forward.1} parent=5 // pred_check_branch
      %135 = sbr.rel (%p132) target = $region28
    $region27: #{mainnet_forward.1} parent=5 // pred_region
      %s136 = ssub.s32 %s8, 1
      %p137 = scmp.lt.s32.totalorder %s17, 1
      %s138 = scalar_select %p137, %s17, 1
      %p139 = scmp.lt.s32.totalorder %s18, 0
      %s140 = scalar_select %p139, %s18, 0
      %s141 = smul.addr %s138, 4
      %s142 = sadd.s32 %s140, %s141
      %s143 = smul.addr %s142, 8
      %s144 = scalar_lea.vmem %s0, %s143
      %p145 = pneg %p48
      %p146 = pneg %p45
      %p147 = pneg %p69
      %p148 = pneg %p66
      %p149 = pneg %p97
      %p150 = pneg %p94
      %p151 = scmp.lt.s32.totalorder %s17, 1
      %s152 = scalar_select %p151, %s17, 1
      %p153 = scmp.lt.s32.totalorder %s18, 0
      %s154 = scalar_select %p153, %s18, 0
      %s155 = smul.addr %s152, 4
      %s156 = sadd.s32 %s154, %s155
      %s157 = smul.addr %s156, 8
      %s158 = scalar_lea.vmem %s2, %s157
      %p159 = scmp.lt.s32.totalorder %s17, 1
      %s160 = scalar_select %p159, %s17, 1
      %p161 = scmp.lt.s32.totalorder %s18, 0
      %s162 = scalar_select %p161, %s18, 0
      %s163 = smul.addr %s160, 4
      %s164 = sadd.s32 %s162, %s163
      %s165 = smul.addr %s164, 8
      %s166 = scalar_lea.vmem %s0, %s165
      %p167 = scmp.lt.s32.totalorder %s17, 1
      %s168 = scalar_select %p167, %s17, 1
      %p169 = scmp.lt.s32.totalorder %s18, 0
      %s170 = scalar_select %p169, %s18, 0
      %s171 = smul.addr %s168, 4
      %s172 = sadd.s32 %s170, %s171
      %s173 = smul.addr %s172, 8
      %s174 = scalar_lea.vmem %s2, %s173
      %v175 = vld [vmem:[%s1] sm:$0xff]
      %v176 = vld [vmem:[%s1 + $0x8] sm:$0xff]
      %v177 = vld [vmem:[%s1 + $0x10] sm:$0xff]
      %v178 = vld [vmem:[%s1 + $0x18] sm:$0xff]
      %v179 = vld [vmem:[%s166] sm:$0xff]
      %v180 = vld [vmem:[%s166 + $0x8] sm:$0xff]
      %v181 = vld [vmem:[%s166 + $0x10] sm:$0xff]
      %v182 = vld [vmem:[%s166 + $0x18] sm:$0xff]
      %vm183 = vcmask 261120
      %v185 = vsel %vm183, %v175, 0
      %v188 = vsel %vm183, %v176, 0
      %v191 = vsel %vm183, %v177, 0
      %v194 = vsel %vm183, %v178, 0
      %196 = vmatprep.subr.mxu0 0.0
      %197 = vmatpush1.msra.mxu0 %v179
      %198 = vmatprep.subr.mxu0 0.0
      %199 = vmatpush1.msra.mxu0 %v180
      %200 = vmatprep.subr.mxu0 0.0
      %201 = vmatpush1.msra.mxu0 %v181
      %202 = vmatprep.subr.mxu0 0.0
      %203 = vmatpush1.msra.mxu0 %v182
      %204 = vmatprep.subr.mxu0 0.0
      %205 = vmatpush1.msra.mxu0 0.0
      %206 = vmatprep.subr.mxu0 0.0
      %207 = vmatpush1.msra.mxu0 0.0
      %208 = vmatprep.subr.mxu0 0.0
      %209 = vmatpush1.msra.mxu0 0.0
      %210 = vmatprep.subr.mxu0 0.0
      %211 = vmatpush1.msra.mxu0 0.0
      %212 = vmatprep.subr.mxu0 0.0
      %213 = vmatpush1.msra.mxu0 0.0
      %214 = vmatprep.subr.mxu0 0.0
      %215 = vmatpush1.msra.mxu0 0.0
      %216 = vmatprep.subr.mxu0 0.0
      %217 = vmatpush1.msra.mxu0 0.0
      %218 = vmatprep.subr.mxu0 0.0
      %219 = vmatpush1.msra.mxu0 0.0
      %220 = vmatprep.subr.mxu0 0.0
      %221 = vmatpush1.msra.mxu0 0.0
      %222 = vmatprep.subr.mxu0 0.0
      %223 = vmatpush1.msra.mxu0 0.0
      %224 = vmatprep.subr.mxu0 0.0
      %225 = vmatpush1.msra.mxu0 0.0
      %226 = vmatprep.subr.mxu0 0.0
      %227 = vmatpush1.msra.mxu0 0.0
      %228 = vmatprep.subr.mxu0 0.0
      %229 = vmatpush1.msra.mxu0 0.0
      %230 = vmatprep.subr.mxu0 0.0
      %231 = vmatpush1.msra.mxu0 0.0
      %232 = vmatprep.subr.mxu0 0.0
      %233 = vmatpush1.msra.mxu0 0.0
      %234 = vmatprep.subr.mxu0 0.0
      %235 = vmatpush1.msra.mxu0 0.0
      %236 = vmatprep.subr.mxu0 0.0
      %237 = vmatpush1.msra.mxu0 0.0
      %238 = vmatprep.subr.mxu0 0.0
      %239 = vmatpush1.msra.mxu0 0.0
      %240 = vmatprep.subr.mxu0 0.0
      %241 = vmatpush1.msra.mxu0 0.0
      %242 = vmatprep.subr.mxu0 0.0
      %243 = vmatpush1.msra.mxu0 0.0
      %244 = vmatprep.subr.mxu0 0.0
      %245 = vmatpush1.msra.mxu0 0.0
      %246 = vmatprep.subr.mxu0 0.0
      %247 = vmatpush1.msra.mxu0 0.0
      %248 = vmatprep.subr.mxu0 0.0
      %249 = vmatpush1.msra.mxu0 0.0
      %250 = vmatprep.subr.mxu0 0.0
      %251 = vmatpush1.msra.mxu0 0.0
      %252 = vmatprep.subr.mxu0 0.0
      %253 = vmatpush1.msra.mxu0 0.0
      %254 = vmatprep.subr.mxu0 0.0
      %255 = vmatpush1.msra.mxu0 0.0
      %256 = vmatprep.subr.mxu0 0.0
      %257 = vmatpush1.msra.mxu0 0.0
      %258 = vmatprep.subr.mxu0 0.0
      %259 = vmatpush1.msra.mxu0 0.0
      %260 = vmatprep.mubr.f32.mxu0 0.0
      %261 = vmatmul.mubr.f32.gmra.mrb[0].mxu0 %v185
      %v262 = vpop.f32.mrb[0].mxu0
      %v263 = vadd.f32 0.0, %v262
      %v264 = vpop.f32.mrb[0].mxu0
      %265 = vmatprep.mubr.f32.mxu0 0.0
      %266 = vmatmul.mubr.f32.gmra.mrb[0].mxu0 %v188
      %v267 = vpop.f32.mrb[0].mxu0
      %v268 = vadd.f32 0.0, %v267
      %v269 = vpop.f32.mrb[0].mxu0
      %270 = vmatprep.mubr.f32.mxu0 0.0
      %271 = vmatmul.mubr.f32.gmra.mrb[0].mxu0 %v191
      %v272 = vpop.f32.mrb[0].mxu0
      %v273 = vadd.f32 0.0, %v272
      %v274 = vpop.f32.mrb[0].mxu0
      %275 = vmatprep.mubr.f32.mxu0 0.0
      %276 = vmatmul.mubr.f32.gmra.mrb[0].mxu0 %v194
      %v277 = vpop.f32.mrb[0].mxu0
      %v278 = vadd.f32 0.0, %v277
      %v279 = vpop.f32.mrb[0].mxu0
      %280 = vdwg.mxu0
      %vm281 = vcmask 523264
      %282 = vst.msk [vmem:[%s174] sm:$0xff] %vm281, %v263
      %283 = vst.msk [vmem:[%s174 + $0x8] sm:$0xff] %vm281, %v268
      %284 = vst.msk [vmem:[%s174 + $0x10] sm:$0xff] %vm281, %v273
      %285 = vst.msk [vmem:[%s174 + $0x18] sm:$0xff] %vm281, %v278
      %p286 = scmp.lt.s32.totalorder %s17, 1
      %s287 = scalar_select %p286, %s17, 1
      %p288 = scmp.lt.s32.totalorder %s18, 0
      %s289 = scalar_select %p288, %s18, 0
      %s290 = smul.addr %s287, 4
      %s291 = sadd.s32 %s289, %s290
      %s292 = smul.addr %s291, 8
      %s293 = scalar_lea.vmem %s2, %s292
      // Predicated region
      $region29: #{mainnet_forward.1} parent=27 // pred_check
        %p294 = pneg %p94
      $region30: #{mainnet_forward.1} parent=27 // pred_check_branch
        %296 = sbr.rel (%p294) target = $region32
      $region31: #{mainnet_forward.1} parent=27 // pred_region
        _
      $region32: #{mainnet_forward.1} parent=27 // pred_fallthru
        _
    $region28: #{mainnet_forward.1} parent=5 // pred_fallthru
      _
    %p297 = scmp.le.s32.totalorder 2, %s8
    // Predicated region
    $region33: #{mainnet_forward.1} parent=5 // pred_check
      %p298 = pneg %p297
    $region34: #{mainnet_forward.1} parent=5 // pred_check_branch
      %300 = sbr.rel (%p298) target = $region36
    $region35: #{mainnet_forward.1} parent=5 // pred_region
      %s301 = ssub.s32 %s8, 2
      // Predicated region
      $region37: #{mainnet_forward.1} parent=35 // pred_check
        %p302 = pneg %p100
      $region38: #{mainnet_forward.1} parent=35 // pred_check_branch
        %304 = sbr.rel (%p302) target = $region40
      $region39: #{mainnet_forward.1} parent=35 // pred_region
        %p305 = scmp.lt.s32.totalorder %s19, 1
        %s306 = scalar_select %p305, %s19, 1
        %p307 = scmp.lt.s32.totalorder %s20, 0
        %s308 = scalar_select %p307, %s20, 0
        %s309 = smul.addr %s306, 4
        %s310 = sadd.s32 %s308, %s309
        %s311 = smul.addr %s310, 8
        %s312 = scalar_lea.vmem %s2, %s311
      $region40: #{mainnet_forward.1} parent=35 // pred_fallthru
        _
    $region36: #{mainnet_forward.1} parent=5 // pred_fallthru
      _
  $region6: #{mainnet_forward.1} parent=0 // loop_footer
    %s12 = sadd.s32 1, %s8
  $region7: #{mainnet_forward.1} parent=0 // loop_footer_branch
    %7 = sbr.rel target = $region3
  $region8: #{mainnet_forward.1} parent=0 // loop_exit
    _

</llo_original>
